<compile_context>
chip_gen: v6e
topology: v6e:2x2x1
jax: 0.10.0
libtpu: 0.0.40
codegen_flags: <defaults>
</compile_context>

<pallas_src>
import functools

import numpy as np

import jax
import jax.numpy as jnp
from jax.experimental import pallas as pl
from jax.experimental.pallas import tpu as pltpu


_BN_EPS = 1e-5


def _round_up(x, m):
    return (x + m - 1) // m * m


def _vmem_config():
    """Per-generation (block_budget_bytes, vmem_limit_bytes)."""
    budget, limit = 12 << 20, 40 << 20            # v7x-safe (64 MiB VMEM / TC)
    try:
        cap = int(getattr(pltpu.get_tpu_info(), "vmem_capacity_bytes", 0) or 0)
        if cap >= (100 << 20):                    # v5e / v6e: 128 MiB physical
            budget, limit = 28 << 20, 64 << 20
    except Exception:
        pass
    return budget, limit


_VMEM_BUDGET, _VMEM_LIMIT = _vmem_config()


# ----------------------------------------------------------------------------
# Pallas kernel: fused  act( X @ W + shift )   (bf16 operands, f32 accumulate)
# ----------------------------------------------------------------------------
def _fused_matmul_kernel(x_ref, w_ref, shift_ref, o_ref, acc_ref, *, act):
    @pl.when(pl.program_id(2) == 0)
    def _():
        acc_ref[...] = jnp.zeros_like(acc_ref)

    acc_ref[...] += jnp.dot(x_ref[...], w_ref[...],
                            preferred_element_type=jnp.float32)

    @pl.when(pl.program_id(2) == pl.num_programs(2) - 1)
    def _():
        y = acc_ref[...] + shift_ref[...]          # (tm,tn) + (1,tn) broadcast
        if act == "leaky_relu":
            y = jnp.where(y >= 0.0, y, 0.2 * y)
        elif act == "relu":
            y = jnp.maximum(y, 0.0)
        elif act == "tanh":
            y = jnp.tanh(y)
        # act == "none": identity
        o_ref[...] = y.astype(o_ref.dtype)


_TM_CANDS = (8192, 4096, 2048, 1024, 512, 256, 128, 64, 32, 16)
_TN_CANDS = (2048, 1024, 512, 256, 128)
_TK_CANDS = (8192, 4096, 2048, 1024, 512, 256, 128)


def _choose_tiles(M, K, N, out_itemsize):
    """Pick (tm, tk, tn, weight_buffer_count) minimizing modeled HBM traffic.

    Traffic model follows Pallas revisiting: the weight block is re-fetched
    per i-block unless the (j,k) grid collapses; the X block is re-fetched per
    j-block only when k is split.  Extra terms: ~0.35us/grid-step overhead,
    a 256-alignment bias for the 256x256 MXUs, and a penalty for leaving the
    parallel N axis unsplit when M collapses (keeps both v7x cores busy).
    """
    in_b, acc_b = 2, 4
    step_cost = 400_000                    # ~0.35 us in HBM-byte equivalents

    tn_cands = [t for t in _TN_CANDS if N % t == 0] or [N]
    tk_cands = [t for t in _TK_CANDS if K % t == 0] or [K]

    best, best_cost = None, None
    for tm in _TM_CANDS:
        Mp = _round_up(M, tm)
        gi = Mp // tm
        for tn in tn_cands:
            gj = N // tn
            for tk in tk_cands:
                gk = K // tk
                w_bufs = 3 if (gi == 1 and gj * gk >= 3) else 2
                vmem = (2 * tm * tk * in_b + w_bufs * tk * tn * in_b
                        + 2 * tm * tn * out_itemsize + tm * tn * acc_b
                        + 2 * tn * 4)
                if vmem > _VMEM_BUDGET:
                    continue
                x_tr = Mp * K * in_b * (gj if gk > 1 else 1)
                w_tr = K * N * in_b * (1 if gj * gk == 1 else gi)
                o_tr = Mp * N * out_itemsize
                cost = float(x_tr + w_tr + o_tr + gi * gj * gk * step_cost)
                if N % 256 == 0 and tn % 256:
                    cost *= 1.05           # prefer MXU-filling 256-wide tiles
                if K % 256 == 0 and tk % 256:
                    cost *= 1.03
                if gi == 1 and gj == 1 and N >= 256:
                    cost *= 1.5            # keep >=2 parallel N blocks (v7x)
                if best_cost is None or cost < best_cost:
                    best, best_cost = (tm, tk, tn, w_bufs), cost
    if best is None:                       # tiny tiles always fit; defensive
        best = (16, tk_cands[-1], tn_cands[-1], 2)
    return best


def fused_matmul(x, w, shift, act, out_dtype=jnp.bfloat16):
    """act((x @ w) + shift) via a tiled Pallas TPU matmul.

    x: (M, K) bf16, w: (K, N) bf16 (pre-packed), shift: (1, N) f32.
    Accumulation is f32 in VMEM; output dtype is `out_dtype`.
    """
    M, K = x.shape
    K2, N = w.shape
    assert K == K2 and shift.shape == (1, N)

    out_itemsize = jnp.dtype(out_dtype).itemsize
    tm, tk, tn, w_bufs = _choose_tiles(M, K, N, out_itemsize)
    Mp = _round_up(M, tm)

    xp = x.astype(jnp.bfloat16)
    if Mp != M:
        xp = jnp.pad(xp, ((0, Mp - M), (0, 0)))

    if w_bufs == 2:
        w_spec = pl.BlockSpec((tk, tn), lambda i, j, k: (k, j))
    else:                                  # deeper weight prefetch (tiny-M layers)
        w_spec = pl.BlockSpec((tk, tn), lambda i, j, k: (k, j),
                              pipeline_mode=pl.Buffered(w_bufs))

    grid = (Mp // tm, N // tn, K // tk)
    out = pl.pallas_call(
        functools.partial(_fused_matmul_kernel, act=act),
        out_shape=jax.ShapeDtypeStruct((Mp, N), out_dtype),
        grid_spec=pltpu.PrefetchScalarGridSpec(
            num_scalar_prefetch=0,
            grid=grid,
            in_specs=[
                pl.BlockSpec((tm, tk), lambda i, j, k: (i, k)),
                w_spec,
                pl.BlockSpec((1, tn), lambda i, j, k: (0, j)),
            ],
            out_specs=pl.BlockSpec((tm, tn), lambda i, j, k: (i, j)),
            scratch_shapes=[pltpu.VMEM((tm, tn), jnp.float32)],
        ),
        compiler_params=pltpu.CompilerParams(
            dimension_semantics=("parallel", "parallel", "arbitrary"),
            vmem_limit_bytes=_VMEM_LIMIT),
    )(xp, w.astype(jnp.bfloat16), shift.astype(jnp.float32))
    return out[:M] if Mp != M else out


# ----------------------------------------------------------------------------
# Patch extraction (bf16, plain-JAX glue)
# ----------------------------------------------------------------------------
def _extract_patches(x, kernel, stride, pad):
    """NHWC -> (N*Ho*Wo, kernel*kernel*C); patch column order (ky, kx, ci)."""
    n, h, w, c = x.shape
    ho = (h + 2 * pad - kernel) // stride + 1
    wo = (w + 2 * pad - kernel) // stride + 1
    xp = jnp.pad(x, ((0, 0), (pad, pad), (pad, pad), (0, 0)))
    taps = []
    for ky in range(kernel):
        for kx in range(kernel):
            taps.append(xp[:, ky:ky + stride * (ho - 1) + 1:stride,
                           kx:kx + stride * (wo - 1) + 1:stride, :])
    pat = jnp.stack(taps, axis=3)                  # (n, ho, wo, k*k, c)
    return pat.reshape(n * ho * wo, kernel * kernel * c), (n, ho, wo)


# ----------------------------------------------------------------------------
# Blocks (operate on pre-packed weights)
# ----------------------------------------------------------------------------
def down_block_apply(x, packed):
    """Conv2d(k4,s2,p1,bias=False) [+ BN(eval)] + LeakyReLU(0.2).  x: NHWC bf16."""
    patches, (n, ho, wo) = _extract_patches(x, kernel=4, stride=2, pad=1)
    co = packed["w"].shape[1]
    y = fused_matmul(patches, packed["w"], packed["shift"], act="leaky_relu")
    return y.reshape(n, ho, wo, co)


def conv_transpose_block_apply(x, packed, act, out_dtype=jnp.bfloat16):
    """ConvTranspose2d(k4,s2,p1) + per-channel affine + act, as ONE matmul.

    Gather formulation: output pixel (2s-1+uy, 2t-1+ux) is produced by exactly
    one 2x2 window of the 1-padded input, so the overlap-add is inside the
    matmul K-reduction; the epilogue is a single bf16 depth-to-space + crop.
    """
    n, h, w, ci = x.shape
    co = packed["w"].shape[1] // 4
    patches, _ = _extract_patches(x, kernel=2, stride=1, pad=1)   # ((h+1)(w+1), 4ci)
    y = fused_matmul(patches, packed["w"], packed["shift"], act=act,
                     out_dtype=out_dtype)
    y = y.reshape(n, h + 1, w + 1, 2, 2, co)
    y = jnp.transpose(y, (0, 1, 3, 2, 4, 5)).reshape(n, 2 * h + 2, 2 * w + 2, co)
    return y[:, 1:2 * h + 1, 1:2 * w + 1, :]


# ----------------------------------------------------------------------------
# One-time weight packing (torch layout -> matmul layout, BN folded, bf16)
# ----------------------------------------------------------------------------
# For output sub-position u in {0,1} and window element e in {0,1} along one
# axis, the contributing ConvTranspose kernel tap is _CT_TAP[u][e]
# (out = 2*i - 1 + k  =>  out 2s-1: taps (2,0); out 2s: taps (3,1)).
_CT_TAP = np.array([[2, 0], [3, 1]], dtype=np.int32)


def _pack_down(w_torch, bn):
    """(Cout,Cin,4,4) conv weight -> {'w': (16*Cin, Cout) bf16, 'shift': (1,Cout) f32}."""
    co = w_torch.shape[0]
    wm = jnp.transpose(w_torch, (2, 3, 1, 0)).reshape(-1, co)      # rows (ky,kx,ci)
    if bn is not None:
        scale = bn["gamma"] / jnp.sqrt(bn["running_var"] + _BN_EPS)
        shift = bn["beta"] - bn["running_mean"] * scale
        wm = wm * scale[None, :]
    else:
        shift = jnp.zeros((co,), jnp.float32)
    return {"w": wm.astype(jnp.bfloat16),
            "shift": shift.reshape(1, co).astype(jnp.float32)}


def _pack_up(w_torch, scale, shift):
    """(Cin,Cout,4,4) convT weight -> {'w': (4*Cin, 4*Cout) bf16, 'shift': (1,4*Cout) f32}.

    Row order (ey, ex, ci) matches the 2x2 window patches of the 1-padded
    input; column order (uy, ux, co) matches the depth-to-space epilogue.
    """
    ci, co = w_torch.shape[0], w_torch.shape[1]
    tap = jnp.asarray(_CT_TAP)
    wg = w_torch[:, :, tap, :]                     # (ci, co, uy, ey, 4)
    wg = wg[:, :, :, :, tap]                       # (ci, co, uy, ey, ux, ex)
    wg = jnp.transpose(wg, (3, 5, 0, 2, 4, 1))     # (ey, ex, ci, uy, ux, co)
    wg = wg * scale                                # fold BN scale (per co)
    wm = wg.reshape(4 * ci, 4 * co)
    sh = jnp.tile(shift, 4).reshape(1, 4 * co)
    return {"w": wm.astype(jnp.bfloat16), "shift": sh.astype(jnp.float32)}


def pack_params(params):
    """One-time repack of torch-layout parameters into matmul-ready arrays."""
    pk = {"down1": _pack_down(params["down1"]["w"], None)}
    for i in range(2, 8):
        p = params[f"down{i}"]
        pk[f"down{i}"] = _pack_down(p["w"], p)
    pk["down8"] = _pack_down(params["down8"]["w"], None)
    for i in range(1, 8):
        p = params[f"up{i}"]
        scale = p["gamma"] / jnp.sqrt(p["running_var"] + _BN_EPS)
        shift = p["beta"] - p["running_mean"] * scale
        pk[f"up{i}"] = _pack_up(p["w"], scale, shift)
    p = params["up8"]
    co = p["w"].shape[1]
    pk["up8"] = _pack_up(p["w"], jnp.ones((co,), jnp.float32), p["b"])
    return pk


# ----------------------------------------------------------------------------
# Parameter init (deterministic, pix2pix-style: N(0, 0.02) conv weights)
# ----------------------------------------------------------------------------
def init_params(key, in_channels=3, out_channels=3):
    keys = iter(jax.random.split(key, 64))

    def conv_w(co, ci):
        return 0.02 * jax.random.normal(next(keys), (co, ci, 4, 4), jnp.float32)

    def convT_w(ci, co):
        return 0.02 * jax.random.normal(next(keys), (ci, co, 4, 4), jnp.float32)

    def bn(c):
        return dict(
            gamma=1.0 + 0.02 * jax.random.normal(next(keys), (c,), jnp.float32),
            beta=0.02 * jax.random.normal(next(keys), (c,), jnp.float32),
            running_mean=jnp.zeros((c,), jnp.float32),
            running_var=jnp.ones((c,), jnp.float32),
        )

    p = {}
    p["down1"] = dict(w=conv_w(64, in_channels))
    p["down2"] = dict(w=conv_w(128, 64), **bn(128))
    p["down3"] = dict(w=conv_w(256, 128), **bn(256))
    p["down4"] = dict(w=conv_w(512, 256), **bn(512))
    p["down5"] = dict(w=conv_w(512, 512), **bn(512))
    p["down6"] = dict(w=conv_w(512, 512), **bn(512))
    p["down7"] = dict(w=conv_w(512, 512), **bn(512))
    p["down8"] = dict(w=conv_w(512, 512))
    p["up1"] = dict(w=convT_w(512, 512), **bn(512))
    p["up2"] = dict(w=convT_w(1024, 512), **bn(512))
    p["up3"] = dict(w=convT_w(1024, 512), **bn(512))
    p["up4"] = dict(w=convT_w(1024, 512), **bn(512))
    p["up5"] = dict(w=convT_w(1024, 256), **bn(256))
    p["up6"] = dict(w=convT_w(512, 128), **bn(128))
    p["up7"] = dict(w=convT_w(256, 64), **bn(64))
    p["up8"] = dict(w=convT_w(128, out_channels),
                    b=0.02 * jax.random.normal(next(keys), (out_channels,),
                                               jnp.float32))
    return p


# ----------------------------------------------------------------------------
# Full forward (accepts/returns NCHW like the PyTorch module; eval mode)
# ----------------------------------------------------------------------------
def generator_unet_forward(packed, x_nchw):
    x = jnp.transpose(x_nchw, (0, 2, 3, 1)).astype(jnp.bfloat16)   # -> NHWC

    d1 = down_block_apply(x, packed["down1"])
    d2 = down_block_apply(d1, packed["down2"])
    d3 = down_block_apply(d2, packed["down3"])
    d4 = down_block_apply(d3, packed["down4"])
    d5 = down_block_apply(d4, packed["down5"])
    d6 = down_block_apply(d5, packed["down6"])
    d7 = down_block_apply(d6, packed["down7"])
    d8 = down_block_apply(d7, packed["down8"])

    u1 = conv_transpose_block_apply(d8, packed["up1"], act="relu")
    u2 = conv_transpose_block_apply(jnp.concatenate([u1, d7], -1), packed["up2"], act="relu")
    u3 = conv_transpose_block_apply(jnp.concatenate([u2, d6], -1), packed["up3"], act="relu")
    u4 = conv_transpose_block_apply(jnp.concatenate([u3, d5], -1), packed["up4"], act="relu")
    u5 = conv_transpose_block_apply(jnp.concatenate([u4, d4], -1), packed["up5"], act="relu")
    u6 = conv_transpose_block_apply(jnp.concatenate([u5, d3], -1), packed["up6"], act="relu")
    u7 = conv_transpose_block_apply(jnp.concatenate([u6, d2], -1), packed["up7"], act="relu")
    out = conv_transpose_block_apply(jnp.concatenate([u7, d1], -1), packed["up8"],
                                     act="tanh", out_dtype=jnp.float32)

    return jnp.transpose(out, (0, 3, 1, 2)).astype(jnp.float32)     # -> NCHW


# ----------------------------------------------------------------------------
# Small brute-force self-checks (validate the conv / convT formulations)
# ----------------------------------------------------------------------------
def _ref_conv2d_s2(x, w):                  # x NHWC f32, w (co,ci,4,4)
    n, h, wd, _ = x.shape
    co = w.shape[0]
    xp = np.pad(x, ((0, 0), (1, 1), (1, 1), (0, 0)))
    ho, wo = h // 2, wd // 2
    out = np.zeros((n, ho, wo, co), np.float32)
    for j in range(ho):
        for i in range(wo):
            patch = xp[:, 2 * j:2 * j + 4, 2 * i:2 * i + 4, :]
            out[:, j, i, :] = np.einsum("nyxc,ocyx->no", patch, w)
    return out


def _ref_conv_transpose_s2(x, w):          # x NHWC f32, w (ci,co,4,4)
    n, h, wd, _ = x.shape
    co = w.shape[1]
    out = np.zeros((n, 2 * h, 2 * wd, co), np.float32)
    for iy in range(h):
        for ix in range(wd):
            contrib = np.einsum("nc,cdyx->nyxd", x[:, iy, ix, :], w)
            for ky in range(4):
                for kx in range(4):
                    oy, ox = 2 * iy - 1 + ky, 2 * ix - 1 + kx
                    if 0 <= oy < 2 * h and 0 <= ox < 2 * wd:
                        out[:, oy, ox, :] += contrib[:, ky, kx, :]
    return out


def _self_check():
    rng = np.random.RandomState(0)

    x = rng.randn(1, 8, 8, 8).astype(np.float32)
    w = (0.2 * rng.randn(16, 8, 4, 4)).astype(np.float32)
    got = down_block_apply(jnp.asarray(x, jnp.bfloat16),
                           _pack_down(jnp.asarray(w), None))
    ref = _ref_conv2d_s2(x, w)
    ref = np.where(ref >= 0, ref, 0.2 * ref)
    np.testing.assert_allclose(np.asarray(got.astype(jnp.float32)), ref,
                               rtol=0.05, atol=0.05)

    x = rng.randn(1, 4, 4, 8).astype(np.float32)
    w = (0.2 * rng.randn(8, 16, 4, 4)).astype(np.float32)
    packed = _pack_up(jnp.asarray(w), jnp.ones((16,), jnp.float32),
                      jnp.zeros((16,), jnp.float32))
    got = conv_transpose_block_apply(jnp.asarray(x, jnp.bfloat16), packed,
                                     act="relu")
    ref = np.maximum(_ref_conv_transpose_s2(x, w), 0.0)
    np.testing.assert_allclose(np.asarray(got.astype(jnp.float32)), ref,
                               rtol=0.05, atol=0.05)


if __name__ == "__main__":
    _self_check()

    key = jax.random.PRNGKey(0)
    pkey, xkey = jax.random.split(key)
    params = init_params(pkey, in_channels=3, out_channels=3)
    packed = pack_params(params)      # one-time weight repack (outside jit)

    # Smallest valid input for 8 stride-2 downsamples: spatial 256 (1x1 at d8).
    x = jax.random.normal(xkey, (1, 3, 256, 256), dtype=jnp.float32)

    fwd = jax.jit(generator_unet_forward)
    out = jax.block_until_ready(fwd(packed, x))

    assert out.shape == (1, 3, 256, 256), out.shape
    assert out.dtype == jnp.float32
    assert bool(jnp.all(jnp.isfinite(out)))
    assert bool(jnp.all(jnp.abs(out) <= 1.0 + 1e-6))   # tanh range
    print("KERNEL_OK")
</pallas_src>

<mosaic_0001>
module attributes {stable_mosaic.version = 11 : i64} {
  func.func @_fused_matmul_kernel(%arg0: i32, %arg1: i32, %arg2: i32, %arg3: memref<16x128xbf16, #tpu.memory_space<vmem>>, %arg4: memref<128x16xbf16, #tpu.memory_space<vmem>>, %arg5: memref<1x16xf32, #tpu.memory_space<vmem>>, %arg6: memref<16x16xbf16, #tpu.memory_space<vmem>>, %arg7: memref<16x16xf32, #tpu.memory_space<vmem>>) attributes {dimension_semantics = [#tpu.dimension_semantics<parallel>, #tpu.dimension_semantics<parallel>, #tpu.dimension_semantics<arbitrary>], iteration_bounds = array<i64: 1, 1, 1>, scalar_prefetch = 0 : i64, scratch_operands = 1 : i64, tpu.core_type = #tpu.core_type<tc>, window_params = [{transform_indices = @transform_0, window_bounds = array<i64: 16, 128>}, {transform_indices = @transform_1, window_bounds = array<i64: 128, 16>}, {transform_indices = @transform_2, window_bounds = array<i64: 1, 16>}, {transform_indices = @transform_3, window_bounds = array<i64: 16, 16>}]} {
    %c0_i32 = arith.constant 0 : i32
    %0 = arith.cmpi eq, %arg2, %c0_i32 : i32
    %1 = arith.extui %0 : i1 to i32
    %c0_i32_0 = arith.constant 0 : i32
    %2 = arith.cmpi ne, %1, %c0_i32_0 : i32
    scf.if %2 {
      %cst_10 = arith.constant 0.000000e+00 : f32
      %12 = vector.broadcast %cst_10 : f32 to vector<16x16xf32>
      %c0_11 = arith.constant 0 : index
      %c0_12 = arith.constant 0 : index
      %13 = vector.load %arg7[%c0_11, %c0_12] : memref<16x16xf32, #tpu.memory_space<vmem>>, vector<16x16xf32>
      tpu.vector_store %arg7[%c0_11, %c0_12], %12 {strides = array<i32>} : memref<16x16xf32, #tpu.memory_space<vmem>>, vector<16x16xf32>,
    } else {
    }
    %c0 = arith.constant 0 : index
    %c0_1 = arith.constant 0 : index
    %3 = vector.load %arg7[%c0, %c0_1] : memref<16x16xf32, #tpu.memory_space<vmem>>, vector<16x16xf32>
    %c0_2 = arith.constant 0 : index
    %c0_3 = arith.constant 0 : index
    %4 = vector.load %arg3[%c0_2, %c0_3] : memref<16x128xbf16, #tpu.memory_space<vmem>>, vector<16x128xbf16>
    %c0_4 = arith.constant 0 : index
    %c0_5 = arith.constant 0 : index
    %5 = vector.load %arg4[%c0_4, %c0_5] : memref<128x16xbf16, #tpu.memory_space<vmem>>, vector<128x16xbf16>
    %cst = arith.constant dense<0.000000e+00> : vector<16x16xf32>
    %6 = tpu.matmul %4, %5, %cst {dimension_numbers = #tpu.dot_dimension_numbers<[1], [0], [0], [1], [0, 0, 1, 1], [], []>} : vector<16x128xbf16>, vector<128x16xbf16>, vector<16x16xf32> -> vector<16x16xf32>
    %7 = arith.addf %3, %6 : vector<16x16xf32>
    %c0_6 = arith.constant 0 : index
    %c0_7 = arith.constant 0 : index
    %8 = vector.load %arg7[%c0_6, %c0_7] : memref<16x16xf32, #tpu.memory_space<vmem>>, vector<16x16xf32>
    tpu.vector_store %arg7[%c0_6, %c0_7], %7 {strides = array<i32>} : memref<16x16xf32, #tpu.memory_space<vmem>>, vector<16x16xf32>,
    %c0_i32_8 = arith.constant 0 : i32
    %9 = arith.cmpi eq, %arg2, %c0_i32_8 : i32
    %10 = arith.extui %9 : i1 to i32
    %c0_i32_9 = arith.constant 0 : i32
    %11 = arith.cmpi ne, %10, %c0_i32_9 : i32
    scf.if %11 {
      %c0_10 = arith.constant 0 : index
      %c0_11 = arith.constant 0 : index
      %12 = vector.load %arg7[%c0_10, %c0_11] : memref<16x16xf32, #tpu.memory_space<vmem>>, vector<16x16xf32>
      %c0_12 = arith.constant 0 : index
      %c0_13 = arith.constant 0 : index
      %13 = vector.load %arg5[%c0_12, %c0_13] : memref<1x16xf32, #tpu.memory_space<vmem>>, vector<1x16xf32>
      %14 = vector.broadcast %13 : vector<1x16xf32> to vector<16x16xf32>
      %15 = arith.addf %12, %14 : vector<16x16xf32>
      %cst_14 = arith.constant 0.000000e+00 : f32
      %16 = vector.broadcast %cst_14 : f32 to vector<16x16xf32>
      %17 = arith.cmpf oge, %15, %16 : vector<16x16xf32>
      %cst_15 = arith.constant 2.000000e-01 : f32
      %18 = vector.broadcast %cst_15 : f32 to vector<16x16xf32>
      %19 = arith.mulf %18, %15 : vector<16x16xf32>
      %20 = arith.select %17, %15, %19 : vector<16x16xi1>, vector<16x16xf32>
      %21 = arith.truncf %20 : vector<16x16xf32> to vector<16x16xbf16>
      %c0_16 = arith.constant 0 : index
      %c0_17 = arith.constant 0 : index
      %22 = vector.load %arg6[%c0_16, %c0_17] : memref<16x16xbf16, #tpu.memory_space<vmem>>, vector<16x16xbf16>
      tpu.vector_store %arg6[%c0_16, %c0_17], %21 {strides = array<i32>} : memref<16x16xbf16, #tpu.memory_space<vmem>>, vector<16x16xbf16>,
    } else {
    }
    return
  }
  func.func @transform_0(%arg0: i32, %arg1: i32, %arg2: i32) -> (i32, i32) {
    %c0_i32 = arith.constant 0 : i32
    return %arg0, %arg2 : i32, i32
  }
  func.func @transform_1(%arg0: i32, %arg1: i32, %arg2: i32) -> (i32, i32) {
    %c0_i32 = arith.constant 0 : i32
    return %arg2, %arg1 : i32, i32
  }
  func.func @transform_2(%arg0: i32, %arg1: i32, %arg2: i32) -> (i32, i32) {
    %c0_i32 = arith.constant 0 : i32
    %c0_i32_0 = arith.constant 0 : i32
    return %c0_i32, %arg1 : i32, i32
  }
  func.func @transform_3(%arg0: i32, %arg1: i32, %arg2: i32) -> (i32, i32) {
    %c0_i32 = arith.constant 0 : i32
    return %arg0, %arg1 : i32, i32
  }
}

</mosaic_0001>

<llo_original>
// kernel: tpu_custom_call.1
$region0: #{tpu_custom_call.1}
  #allocation0 [shape = 'u32[]', space=smem, size = 0x4, offset = 0x4, fixed_abs, tag = 'smem constant byte address 0x4 - core index']
  #allocation1 [shape = 'u32[144,128]{1,0:T(1,128)}', space=vmem, size = 0x12000, scoped, tag = 'internal scratch']
  #allocation2 [shape = 'f32[16,16]{1,0:T(8,128)}', space=vmem, size = 0x2000, scoped, tag = 'scratch operand']
  %s0 = inlined_call_operand.vmem [shape: bf16[16,128], index: 0, kind: input, shape index: {}]
  %s1 = inlined_call_operand.vmem [shape: bf16[128,16], index: 1, kind: input, shape index: {}]
  %s2 = inlined_call_operand.vmem [shape: f32[1,16], index: 2, kind: input, shape index: {}]
  %s3 = inlined_call_operand.hbm [shape: bf16[16,16], index: 3, kind: output, shape index: {}]
  %s4 = sld [smem:[#allocation0]]
  $region30: #{tpu_custom_call.1} parent=0
    _
  %s6 = ssub.s32 1, %s4
  %s7 = scalar_select 0, %s6, %s4
  $region1: #{tpu_custom_call.1} parent=0
    #allocation3 [shape = 'u8[4096]{0}', space=vmem, size = 0x1000, scoped, tag = 'output window, operand 0, single buffered']
    #allocation4 [shape = 's32[1]{0}', space=sflag, size = 0x4, scoped, tag = 'scoped memory for tpu_custom_call.1']
    %8 = vsyncpa [#allocation4], 0
    // Predicated region
    $region2: #{tpu_custom_call.1} parent=1 // pred_check
      _
    $region3: #{tpu_custom_call.1} parent=1 // pred_check_branch
      %10 = sbr.rel (0) target = $region5
    $region4: #{tpu_custom_call.1} parent=1 // pred_region
      _
    $region5: #{tpu_custom_call.1} parent=1 // pred_fallthru
      _
    // Predicated region
    $region6: #{tpu_custom_call.1} parent=1 // pred_check
      _
    $region7: #{tpu_custom_call.1} parent=1 // pred_check_branch
      %12 = sbr.rel (0) target = $region9
    $region8: #{tpu_custom_call.1} parent=1 // pred_region
      _
    $region9: #{tpu_custom_call.1} parent=1 // pred_fallthru
      _
    // Predicated region
    $region10: #{tpu_custom_call.1} parent=1 // pred_check
      _
    $region11: #{tpu_custom_call.1} parent=1 // pred_check_branch
      %14 = sbr.rel (0) target = $region13
    $region12: #{tpu_custom_call.1} parent=1 // pred_region
      _
    $region13: #{tpu_custom_call.1} parent=1 // pred_fallthru
      _
    %p16 = scmp.eq.s32.totalorder 0, 0
    // Predicated region
    $region14: #{tpu_custom_call.1} parent=1 // pred_check
      %p17 = pneg %p16
    $region15: #{tpu_custom_call.1} parent=1 // pred_check_branch
      %19 = sbr.rel (%p17) target = $region17
    $region16: #{tpu_custom_call.1} parent=1 // pred_region
      %vm20 = vcmask 130048
      %21 = vst.msk [vmem:[#allocation2] sm:$0xff] %vm20, 0.0
      %22 = vst.msk [vmem:[#allocation2 + $0x8] sm:$0xff] %vm20, 0.0
    $region17: #{tpu_custom_call.1} parent=1 // pred_fallthru
      _
    %v23 = vld [vmem:[#allocation2] sm:$0xff]
    %v24 = vld [vmem:[#allocation2 + $0x8] sm:$0xff]
    %v25 = vld [vmem:[%s0] sm:$0xf]
    %v26 = vld [vmem:[%s0 + $0x4] sm:$0xf]
    %v27 = vld [vmem:[%s1] sm:$0xf]
    %v28 = vld [vmem:[%s1 + $0x4] sm:$0xf]
    %v29 = vld [vmem:[%s1 + $0x8] sm:$0xf]
    %v30 = vld [vmem:[%s1 + $0xc] sm:$0xf]
    %v31 = vld [vmem:[%s1 + $0x10] sm:$0xf]
    %v32 = vld [vmem:[%s1 + $0x14] sm:$0xf]
    %v33 = vld [vmem:[%s1 + $0x18] sm:$0xf]
    %v34 = vld [vmem:[%s1 + $0x1c] sm:$0xf]
    %v35 = vld [vmem:[%s1 + $0x20] sm:$0xf]
    %v36 = vld [vmem:[%s1 + $0x24] sm:$0xf]
    %v37 = vld [vmem:[%s1 + $0x28] sm:$0xf]
    %v38 = vld [vmem:[%s1 + $0x2c] sm:$0xf]
    %v39 = vld [vmem:[%s1 + $0x30] sm:$0xf]
    %v40 = vld [vmem:[%s1 + $0x34] sm:$0xf]
    %v41 = vld [vmem:[%s1 + $0x38] sm:$0xf]
    %v42 = vld [vmem:[%s1 + $0x3c] sm:$0xf]
    %v45 = vunpack.c.l.b16 %v25
    %v46 = vunpack.c.l.b16 %v26
    %v47 = vpack.c.b16 %v46, %v45
    %v65 = vunpack.c.l.b16 %v27
    %v66 = vunpack.c.l.b16 %v28
    %v67 = vunpack.c.l.b16 %v29
    %v68 = vunpack.c.l.b16 %v30
    %v69 = vunpack.c.l.b16 %v31
    %v70 = vunpack.c.l.b16 %v32
    %v71 = vunpack.c.l.b16 %v33
    %v72 = vunpack.c.l.b16 %v34
    %v73 = vunpack.c.l.b16 %v35
    %v74 = vunpack.c.l.b16 %v36
    %v75 = vunpack.c.l.b16 %v37
    %v76 = vunpack.c.l.b16 %v38
    %v77 = vunpack.c.l.b16 %v39
    %v78 = vunpack.c.l.b16 %v40
    %v79 = vunpack.c.l.b16 %v41
    %v80 = vunpack.c.l.b16 %v42
    %v81 = vpack.c.b16 %v66, %v65
    %v82 = vpack.c.b16 %v68, %v67
    %v83 = vpack.c.b16 %v70, %v69
    %v84 = vpack.c.b16 %v72, %v71
    %v85 = vpack.c.b16 %v74, %v73
    %v86 = vpack.c.b16 %v76, %v75
    %v87 = vpack.c.b16 %v78, %v77
    %v88 = vpack.c.b16 %v80, %v79
    %97 = vmatprep.subr.bf16.mxu0 0
    %98 = vmatpush1.bf16.msra.mxu0 %v88
    %99 = vmatprep.subr.bf16.mxu0 0
    %100 = vmatpush1.bf16.msra.mxu0 %v87
    %101 = vmatprep.subr.bf16.mxu0 0
    %102 = vmatpush1.bf16.msra.mxu0 %v86
    %103 = vmatprep.subr.bf16.mxu0 0
    %104 = vmatpush1.bf16.msra.mxu0 %v85
    %105 = vmatprep.subr.bf16.mxu0 0
    %106 = vmatpush1.bf16.msra.mxu0 %v84
    %107 = vmatprep.subr.bf16.mxu0 0
    %108 = vmatpush1.bf16.msra.mxu0 %v83
    %109 = vmatprep.subr.bf16.mxu0 0
    %110 = vmatpush1.bf16.msra.mxu0 %v82
    %111 = vmatprep.subr.bf16.mxu0 0
    %112 = vmatpush1.bf16.msra.mxu0 %v81
    %113 = vmatprep.subr.bf16.mxu0 0
    %114 = vmatpush2.bf16.msra.mxu0 0
    %115 = vmatprep.subr.bf16.mxu0 0
    %116 = vmatpush2.bf16.msra.mxu0 0
    %117 = vmatprep.subr.bf16.mxu0 0
    %118 = vmatpush2.bf16.msra.mxu0 0
    %119 = vmatprep.subr.bf16.mxu0 0
    %120 = vmatpush2.bf16.msra.mxu0 0
    %121 = vmatprep.subr.bf16.mxu0 0
    %122 = vmatpush2.bf16.msra.mxu0 0
    %123 = vmatprep.subr.bf16.mxu0 0
    %124 = vmatpush2.bf16.msra.mxu0 0
    %125 = vmatprep.subr.bf16.mxu0 0
    %126 = vmatpush2.bf16.msra.mxu0 0
    %127 = vmatprep.subr.bf16.mxu0 0
    %128 = vmatpush2.bf16.msra.mxu0 0
    %129 = vmatprep.mubr.bf16.mxu0 0
    %130 = vmatmul.mubr.bf16.gmra.mxu0 %v47
    %v131 = vpop.f32.mrf.mxu0
    %v132 = vadd.f32 0.0, %v131
    %v133 = vpop.f32.mrf.mxu0
    %v134 = vpop.f32.mrf.mxu0
    %v135 = vadd.f32 0.0, %v134
    %v136 = vpop.f32.mrf.mxu0
    %137 = vdwg.mxu0
    %v138 = vadd.f32 %v23, %v132
    %v139 = vadd.f32 %v24, %v135
    %vm140 = vcmask 130048
    %141 = vst.msk [vmem:[#allocation2] sm:$0xff] %vm140, %v138
    %142 = vst.msk [vmem:[#allocation2 + $0x8] sm:$0xff] %vm140, %v139
    // Predicated region
    $region18: #{tpu_custom_call.1} parent=1 // pred_check
      %p143 = pneg %p16
    $region19: #{tpu_custom_call.1} parent=1 // pred_check_branch
      %145 = sbr.rel (%p143) target = $region21
    $region20: #{tpu_custom_call.1} parent=1 // pred_region
      %v146 = vld [vmem:[#allocation2] sm:$0xff]
      %v147 = vld [vmem:[#allocation2 + $0x8] sm:$0xff]
      %v148 = vld [vmem:[%s2] sm:$0x1]
      %v150 = vlaneseq
      %v151 = vshrl.u32 %v150, 7
      %v152 = vsub.s32 0, %v151
      %v153 = vrot.slane %v148, %v152
      %v155 = vadd.f32 %v146, %v153
      %v156 = vadd.f32 %v147, %v153
      %vm157 = vcmp.ge.f32.partialorder %v155, 0.0
      %vm158 = vcmp.ge.f32.partialorder %v156, 0.0
      %v159 = vmul.f32 %v155, 0.2
      %v160 = vmul.f32 %v156, 0.2
      %v161 = vsel %vm157, %v155, %v159
      %v162 = vsel %vm158, %v156, %v160
      %v163 = vpack.c.bf16 %v162, %v161
      %v165 = vunpack.c.l.b16 %v163
      %v166 = vunpack.c.h.b16 %v163
      %v167 = vpack.c.b16 %v165, %v165
      %v168 = vpack.c.b16 %v166, %v166
      %vm171 = vcmask 125952
      %172 = vst.msk [vmem:[#allocation3] sm:$0xf] %vm171, %v167
      %173 = vst.msk [vmem:[#allocation3 + $0x4] sm:$0xf] %vm171, %v168
    $region21: #{tpu_custom_call.1} parent=1 // pred_fallthru
      _
    // Predicated region
    $region22: #{tpu_custom_call.1} parent=1 // pred_check
      _
    $region23: #{tpu_custom_call.1} parent=1 // pred_check_branch
      %175 = sbr.rel (0) target = $region25
    $region24: #{tpu_custom_call.1} parent=1 // pred_region
      %s177 = ssub.s32 128, 128
      %178 = vsyncadd [#allocation4], %s177
      %s179 = sshll.u32 [#allocation3], 4
      %s180 = int_to_ptr.vmem [resolvable:$true] %s179
      %185 = dma.vmem_to_hbm [thread:$0]  %s180, 128, %s3, [#allocation4], 64, 64, 4
    $region25: #{tpu_custom_call.1} parent=1 // pred_fallthru
      _
    // Predicated region
    $region26: #{tpu_custom_call.1} parent=1 // pred_check
      _
    $region27: #{tpu_custom_call.1} parent=1 // pred_check_branch
      %187 = sbr.rel (0) target = $region29
    $region28: #{tpu_custom_call.1} parent=1 // pred_region
      %188 = dma.done [#allocation4], 128
    $region29: #{tpu_custom_call.1} parent=1 // pred_fallthru
      _
    %189 = vsyncpa [#allocation4], 1

</llo_original>
